<compile_context>
chip_gen: v5e
topology: v5e:2x2
jax: 0.10.0
libtpu: 0.0.40
codegen_flags: <defaults>
</compile_context>

<pallas_src>
import functools

import jax
import jax.numpy as jnp
from jax.experimental import pallas as pl
from jax.experimental.pallas import tpu as pltpu


# ---------------------------------------------------------------------------
# Pass 1: LayerNorm + Q/K projections (+ pre-cast V copy), once per row.
# ---------------------------------------------------------------------------
def _proj_kernel(x_ref, gamma_ref, beta_ref, wq_ref, bq_ref, wk_ref, bk_ref,
                 q_ref, k_ref, v_ref, *, mxu_dtype):
    x = x_ref[0].astype(jnp.float32)                       # (TS, C)
    # Single-pass LayerNorm statistics: var = E[x^2] - E[x]^2 (one XLU pass).
    mean = jnp.mean(x, axis=-1, keepdims=True)
    mean_sq = jnp.mean(x * x, axis=-1, keepdims=True)
    var = mean_sq - mean * mean
    h = ((x - mean) * jax.lax.rsqrt(var + 1e-5) * gamma_ref[0]
         + beta_ref[0]).astype(mxu_dtype)
    # Wq^T / bq already carry the 1/sqrt(out_channels) score scale.
    q = jnp.dot(h, wq_ref[...], preferred_element_type=jnp.float32) + bq_ref[0]
    k = jnp.dot(h, wk_ref[...], preferred_element_type=jnp.float32) + bk_ref[0]
    q_ref[0] = q.astype(q_ref.dtype)
    k_ref[0] = k.astype(k_ref.dtype)
    # Attention weights are applied to the ORIGINAL (pre-LayerNorm) x; emit
    # it pre-cast so the attention pass reads it at mxu_dtype width.
    v_ref[0] = x_ref[0].astype(v_ref.dtype)


# ---------------------------------------------------------------------------
# Pass 2a: attention with a whole-S KV slab resident in VMEM (per batch).
# ---------------------------------------------------------------------------
def _attn_whole_kernel(q_ref, k_ref, v_ref, xq_ref, o_ref, *,
                       exp_dtype, approx_recip):
    q = q_ref[0]                                           # (TQ, C)
    k = k_ref[0]                                           # (S,  C)
    v = v_ref[0]                                           # (S,  C)
    # (TQ, S) scores: contract last dims of both operands (no K transpose).
    s = jax.lax.dot_general(q, k, (((1,), (1,)), ((), ())),
                            preferred_element_type=jnp.float32)
    m = jnp.max(s, axis=-1, keepdims=True)
    p = jnp.exp((s - m).astype(exp_dtype))                 # bf16 exp on perf path
    l = jnp.sum(p.astype(jnp.float32), axis=-1, keepdims=True)
    out = jnp.dot(p.astype(v.dtype), v, preferred_element_type=jnp.float32)
    inv_l = pl.reciprocal(l, approx=approx_recip)          # EUP slot
    o_ref[0] = (out * inv_l + xq_ref[0].astype(jnp.float32)).astype(o_ref.dtype)


# ---------------------------------------------------------------------------
# Pass 2b: flash-style fallback (online softmax across KV tiles).
# ---------------------------------------------------------------------------
def _attn_flash_kernel(q_ref, k_ref, v_ref, xq_ref, o_ref,
                       m_scr, l_scr, acc_scr, *, exp_dtype, approx_recip):
    ki = pl.program_id(2)
    nk = pl.num_programs(2)

    @pl.when(ki == 0)
    def _():
        m_scr[...] = jnp.full_like(m_scr, -jnp.inf)
        l_scr[...] = jnp.zeros_like(l_scr)
        acc_scr[...] = jnp.zeros_like(acc_scr)

    q = q_ref[0]                                           # (TQ,  C)
    k = k_ref[0]                                           # (TKV, C)
    v = v_ref[0]                                           # (TKV, C)
    s = jax.lax.dot_general(q, k, (((1,), (1,)), ((), ())),
                            preferred_element_type=jnp.float32)
    m_prev = m_scr[...]
    m_new = jnp.maximum(m_prev, jnp.max(s, axis=-1, keepdims=True))
    alpha = jnp.exp(m_prev - m_new)                        # (TQ, 1), stays f32
    p = jnp.exp((s - m_new).astype(exp_dtype))
    l_scr[...] = alpha * l_scr[...] + jnp.sum(p.astype(jnp.float32),
                                              axis=-1, keepdims=True)
    acc_scr[...] = alpha * acc_scr[...] + jnp.dot(
        p.astype(v.dtype), v, preferred_element_type=jnp.float32)
    m_scr[...] = m_new

    @pl.when(ki == nk - 1)
    def _():
        inv_l = pl.reciprocal(l_scr[...], approx=approx_recip)
        o_ref[0] = (acc_scr[...] * inv_l
                    + xq_ref[0].astype(jnp.float32)).astype(o_ref.dtype)


# ---------------------------------------------------------------------------
# Helpers: tile picking, VMEM budgeting, Buffered() feature probe.
# ---------------------------------------------------------------------------
def _pick_tile(dim, cap):
    """Largest multiple-of-8 divisor of `dim` that is <= cap (or dim itself
    when dim <= cap or no such divisor exists)."""
    if dim <= cap:
        return dim
    cap = max(8, (cap // 8) * 8)
    for t in range(cap, 7, -8):
        if dim % t == 0:
            return t
    return dim


def _shrink_tile(dim, t):
    """Next smaller valid tile, or t unchanged if it cannot shrink."""
    if t <= 8:
        return t
    new = _pick_tile(dim, max(8, t // 2))
    return new if new < t else t


def _vmem_budget_bytes():
    # Generation-aware budget: 0.75 * per-core VMEM capacity.  The fallback
    # (64 MiB -> 48 MiB budget) is v7x-safe; v5e/v6e report 128 MiB.  The
    # try/except only guards the hardware query, not any compile path.
    cap = 64 * 1024 * 1024
    try:
        cap = int(pltpu.get_tpu_info().vmem_capacity_bytes)
    except Exception:
        pass
    return (3 * cap) // 4


@functools.lru_cache(maxsize=None)
def _buffered_kwargs(n):
    """Narrow feature probe for BlockSpec(pipeline_mode=pl.Buffered(n))."""
    if not hasattr(pl, "Buffered"):
        return {}
    try:
        pl.BlockSpec((8, 128), lambda i: (0, 0), pipeline_mode=pl.Buffered(n))
    except TypeError:
        return {}
    return {"pipeline_mode": pl.Buffered(n)}


def _proj_vmem(TS, C, wb, wbufs):
    return (2 * TS * C * 4                       # x input blocks
            + wbufs * 2 * C * C * wb             # Wq^T, Wk^T
            + wbufs * 4 * C * 4                  # gamma/beta/bq/bk
            + 3 * 2 * TS * C * wb                # q/k/v output blocks
            + 4 * TS * C * 4)                    # f32 temporaries


def _whole_attn_vmem(TQ, S, C, wb):
    return (2 * TQ * C * wb                      # q blocks
            + 2 * 2 * S * C * wb                 # whole-S K and V slabs
            + 2 * TQ * C * 4                     # residual x blocks
            + 2 * TQ * C * 4                     # output blocks
            + TQ * S * 4 + TQ * S * wb           # s / p temporaries
            + TQ * C * 4)                        # out temporary


def _flash_attn_vmem(TQ, TKV, C, wb, kv_bufs):
    return (2 * TQ * C * wb
            + 2 * kv_bufs * TKV * C * wb         # K and V streams
            + 2 * TQ * C * 4                     # residual x blocks
            + 2 * TQ * C * 4                     # output blocks
            + TQ * TKV * 4 + TQ * TKV * wb       # s / p temporaries
            + TQ * C * 4 + 2 * TQ * 4            # acc / m / l scratch
            + TQ * C * 4)


def _vmem_limit(estimate, budget):
    return int(min(budget, max(16 * 1024 * 1024, 2 * estimate)))


# ---------------------------------------------------------------------------
# Wrapper.
# ---------------------------------------------------------------------------
def alignment_score_pallas(x, params, *, tq=256, tkv=512, ts=256,
                           mxu_dtype=jnp.bfloat16, kv_whole=None):
    """x: (B, S, C) float32.  mxu_dtype controls matmul-operand precision
    (bf16 = fast MXU path with f32 accumulation, f32 = bit-accurate mode).
    kv_whole: None = auto (whole-S KV slab when it fits VMEM), True/False to
    force the whole-S / flash-tiled attention path."""
    B, S, C = x.shape
    wb = jnp.dtype(mxu_dtype).itemsize
    f32_mode = jnp.dtype(mxu_dtype) == jnp.dtype(jnp.float32)
    approx_recip = not f32_mode
    exp_dtype = jnp.float32 if f32_mode else jnp.bfloat16
    budget = _vmem_budget_bytes()

    # Fold the 1/sqrt(out_channels) score scale into the Q projection
    # (O(S*C) work instead of scaling the O(S^2) score matrix).
    scale = 1.0 / (float(C) ** 0.5)
    gamma = params["ln_gamma"].astype(jnp.float32).reshape(1, C)
    beta = params["ln_beta"].astype(jnp.float32).reshape(1, C)
    wq_t = (params["wq"].astype(jnp.float32).T * scale).astype(mxu_dtype)
    bq = (params["bq"].astype(jnp.float32) * scale).reshape(1, C)
    wk_t = params["wk"].astype(jnp.float32).T.astype(mxu_dtype)
    bk = params["bk"].astype(jnp.float32).reshape(1, C)

    # ---------------- pass 1: LayerNorm + Q/K projections + V cast ---------
    wbuf = _buffered_kwargs(1)                   # single-buffer invariants
    wbufs = 1 if wbuf else 2
    TS = _pick_tile(S, ts)
    while _proj_vmem(TS, C, wb, wbufs) > budget:
        new = _shrink_tile(S, TS)
        if new == TS:
            break
        TS = new

    def inv_vec_spec():
        return pl.BlockSpec((1, C), lambda b, i: (0, 0), **wbuf)

    def inv_mat_spec():
        return pl.BlockSpec((C, C), lambda b, i: (0, 0), **wbuf)

    def row_spec():
        return pl.BlockSpec((1, TS, C), lambda b, i: (b, i, 0))

    proj_cost = pl.CostEstimate(
        flops=int(B * S * (4 * C * C + 10 * C)),
        transcendentals=int(B * S),
        bytes_accessed=int(B * S * C * (4 + 3 * wb) + 2 * C * C * wb + 16 * C),
    )
    q_all, k_all, v_all = pl.pallas_call(
        functools.partial(_proj_kernel, mxu_dtype=mxu_dtype),
        out_shape=(jax.ShapeDtypeStruct((B, S, C), mxu_dtype),
                   jax.ShapeDtypeStruct((B, S, C), mxu_dtype),
                   jax.ShapeDtypeStruct((B, S, C), mxu_dtype)),
        grid_spec=pltpu.PrefetchScalarGridSpec(
            num_scalar_prefetch=0,
            grid=(B, S // TS),
            in_specs=[
                row_spec(),                      # x
                inv_vec_spec(), inv_vec_spec(),  # gamma, beta
                inv_mat_spec(), inv_vec_spec(),  # Wq^T (scaled), bq (scaled)
                inv_mat_spec(), inv_vec_spec(),  # Wk^T, bk
            ],
            out_specs=[row_spec(), row_spec(), row_spec()],
        ),
        compiler_params=pltpu.CompilerParams(
            dimension_semantics=("parallel", "parallel"),
            vmem_limit_bytes=_vmem_limit(_proj_vmem(TS, C, wb, wbufs), budget)),
        cost_estimate=proj_cost,
    )(x, gamma, beta, wq_t, bq, wk_t, bk)

    # ---------------- pass 2: softmax(Q K^T) @ x + x -----------------------
    TQ = _pick_tile(S, tq)
    attn_cost = pl.CostEstimate(
        flops=int(4 * B * S * S * C),
        transcendentals=int(B * S * S + B * S),
        bytes_accessed=int(B * S * C * (3 * wb + 8)),
    )

    if kv_whole is None:
        use_whole = _whole_attn_vmem(8, S, C, wb) <= budget
    else:
        use_whole = bool(kv_whole)

    if use_whole:
        while _whole_attn_vmem(TQ, S, C, wb) > budget:
            new = _shrink_tile(S, TQ)
            if new == TQ:
                break
            TQ = new
        nq = S // TQ
        return pl.pallas_call(
            functools.partial(_attn_whole_kernel, exp_dtype=exp_dtype,
                              approx_recip=approx_recip),
            out_shape=jax.ShapeDtypeStruct((B, S, C), x.dtype),
            grid_spec=pltpu.PrefetchScalarGridSpec(
                num_scalar_prefetch=0,
                grid=(B, nq),
                in_specs=[
                    pl.BlockSpec((1, TQ, C), lambda b, qi: (b, qi, 0)),  # Q
                    pl.BlockSpec((1, S, C), lambda b, qi: (b, 0, 0)),    # K (once/batch)
                    pl.BlockSpec((1, S, C), lambda b, qi: (b, 0, 0)),    # V (once/batch)
                    pl.BlockSpec((1, TQ, C), lambda b, qi: (b, qi, 0)),  # x residual
                ],
                out_specs=pl.BlockSpec((1, TQ, C), lambda b, qi: (b, qi, 0)),
            ),
            compiler_params=pltpu.CompilerParams(
                dimension_semantics=("parallel", "parallel"),
                vmem_limit_bytes=_vmem_limit(_whole_attn_vmem(TQ, S, C, wb),
                                             budget)),
            cost_estimate=attn_cost,
        )(q_all, k_all, v_all, x)

    # Flash fallback: tiled KV with deeper pipelining on the KV/V streams.
    TKV = _pick_tile(S, tkv)
    kvbuf = _buffered_kwargs(3)
    kv_depth = 3 if kvbuf else 2
    while _flash_attn_vmem(TQ, TKV, C, wb, kv_depth) > budget:
        new = _shrink_tile(S, TKV)
        if new < TKV:
            TKV = new
            continue
        new = _shrink_tile(S, TQ)
        if new < TQ:
            TQ = new
            continue
        break
    nq, nk = S // TQ, S // TKV
    return pl.pallas_call(
        functools.partial(_attn_flash_kernel, exp_dtype=exp_dtype,
                          approx_recip=approx_recip),
        out_shape=jax.ShapeDtypeStruct((B, S, C), x.dtype),
        grid_spec=pltpu.PrefetchScalarGridSpec(
            num_scalar_prefetch=0,
            grid=(B, nq, nk),
            in_specs=[
                pl.BlockSpec((1, TQ, C), lambda b, qi, ki: (b, qi, 0)),
                pl.BlockSpec((1, TKV, C), lambda b, qi, ki: (b, ki, 0), **kvbuf),
                pl.BlockSpec((1, TKV, C), lambda b, qi, ki: (b, ki, 0), **kvbuf),
                pl.BlockSpec((1, TQ, C), lambda b, qi, ki: (b, qi, 0)),
            ],
            out_specs=pl.BlockSpec((1, TQ, C), lambda b, qi, ki: (b, qi, 0)),
            scratch_shapes=[
                pltpu.VMEM((TQ, 1), jnp.float32),   # running row max
                pltpu.VMEM((TQ, 1), jnp.float32),   # running row sum
                pltpu.VMEM((TQ, C), jnp.float32),   # output accumulator
            ],
        ),
        compiler_params=pltpu.CompilerParams(
            dimension_semantics=("parallel", "parallel", "arbitrary"),
            vmem_limit_bytes=_vmem_limit(
                _flash_attn_vmem(TQ, TKV, C, wb, kv_depth), budget)),
        cost_estimate=attn_cost,
    )(q_all, k_all, v_all, x)


# ---------------------------------------------------------------------------
# Parameter init + pure-JAX reference.
# ---------------------------------------------------------------------------
def init_params(key, in_channels, out_channels):
    """Deterministic parameter init (shapes from the module's __init__)."""
    ks = jax.random.split(key, 8)
    c_in, c_out = in_channels, out_channels
    return {
        # LayerNorm(out_channels): default init gamma=1, beta=0
        "ln_gamma": jnp.ones((c_out,), jnp.float32),
        "ln_beta": jnp.zeros((c_out,), jnp.float32),
        # Q, K: nn.Linear(in_channels, out_channels)
        "wq": jax.random.normal(ks[0], (c_out, c_in), jnp.float32) * 0.05,
        "bq": jax.random.normal(ks[1], (c_out,), jnp.float32) * 0.05,
        "wk": jax.random.normal(ks[2], (c_out, c_in), jnp.float32) * 0.05,
        "bk": jax.random.normal(ks[3], (c_out,), jnp.float32) * 0.05,
        # fc_up / fc_down exist in __init__ but are unused in forward()
        "fc_up_w": jax.random.normal(ks[4], (2 * c_out, c_in), jnp.float32) * 0.05,
        "fc_up_b": jnp.zeros((2 * c_out,), jnp.float32),
        "fc_down_w": jax.random.normal(ks[5], (c_out, 2 * c_out), jnp.float32) * 0.05,
        "fc_down_b": jnp.zeros((c_out,), jnp.float32),
    }


def alignment_score_ref(x, params):
    """Pure-JAX f32 reference (highest matmul precision) for checking."""
    hi = jax.lax.Precision.HIGHEST
    g, b = params["ln_gamma"], params["ln_beta"]
    mean = jnp.mean(x, axis=-1, keepdims=True)
    var = jnp.mean((x - mean) ** 2, axis=-1, keepdims=True)
    h = (x - mean) / jnp.sqrt(var + 1e-5) * g + b
    q = jnp.einsum("bsc,oc->bso", h, params["wq"], precision=hi) + params["bq"]
    k = jnp.einsum("bsc,oc->bso", h, params["wk"], precision=hi) + params["bk"]
    c = params["wq"].shape[0]
    a = jnp.einsum("bqd,bkd->bqk", q, k, precision=hi) / (c ** 0.5)
    s = jax.nn.softmax(a, axis=-1)
    return jnp.einsum("bqk,bkd->bqd", s, x, precision=hi) + x


if __name__ == "__main__":
    key = jax.random.PRNGKey(0)
    kx1, kp1, kx2, kp2 = jax.random.split(key, 4)

    # Small shape implied by the module's (B, N, C) usage; in == out channels.
    B, S, C = 2, 8, 32
    x = jax.random.normal(kx1, (B, S, C), jnp.float32)
    params = init_params(kp1, C, C)
    ref = alignment_score_ref(x, params)

    # Bit-accurate mode (f32 MXU operands, f32 exp, exact reciprocal).
    out_f32 = jax.block_until_ready(
        alignment_score_pallas(x, params, mxu_dtype=jnp.float32))
    assert out_f32.shape == (B, S, C)
    assert jnp.allclose(out_f32, ref, atol=1e-4, rtol=1e-4), (
        float(jnp.max(jnp.abs(out_f32 - ref))))

    # Performance mode (bf16 MXU operands + bf16 exp, f32 accumulation).
    out_bf16 = jax.block_until_ready(alignment_score_pallas(x, params))
    assert jnp.allclose(out_bf16, ref, atol=2e-2, rtol=2e-2), (
        float(jnp.max(jnp.abs(out_bf16 - ref))))

    # Larger shape exercising the multi-q-tile whole-S-KV path (nq=2).
    B2, S2, C2 = 2, 256, 128
    x2 = jax.random.normal(kx2, (B2, S2, C2), jnp.float32)
    params2 = init_params(kp2, C2, C2)
    ref2 = alignment_score_ref(x2, params2)

    out2_f32 = jax.block_until_ready(
        alignment_score_pallas(x2, params2, tq=128, mxu_dtype=jnp.float32))
    assert jnp.allclose(out2_f32, ref2, atol=1e-4, rtol=1e-4), (
        float(jnp.max(jnp.abs(out2_f32 - ref2))))
    out2_bf16 = jax.block_until_ready(
        alignment_score_pallas(x2, params2, tq=128))
    assert jnp.allclose(out2_bf16, ref2, atol=2e-2, rtol=2e-2), (
        float(jnp.max(jnp.abs(out2_bf16 - ref2))))

    # Force the flash-tiled fallback path (online softmax across KV tiles).
    out3_f32 = jax.block_until_ready(
        alignment_score_pallas(x2, params2, tq=128, tkv=128,
                               mxu_dtype=jnp.float32, kv_whole=False))
    assert jnp.allclose(out3_f32, ref2, atol=1e-4, rtol=1e-4), (
        float(jnp.max(jnp.abs(out3_f32 - ref2))))
    out3_bf16 = jax.block_until_ready(
        alignment_score_pallas(x2, params2, tq=128, tkv=128, kv_whole=False))
    assert jnp.allclose(out3_bf16, ref2, atol=2e-2, rtol=2e-2), (
        float(jnp.max(jnp.abs(out3_bf16 - ref2))))

    print("KERNEL_OK")
</pallas_src>

<mosaic_0001>
module attributes {stable_mosaic.version = 11 : i64} {
  func.func @_proj_kernel(%arg0: i32, %arg1: i32, %arg2: memref<1x8x32xf32, #tpu.memory_space<vmem>>, %arg3: memref<1x32xf32, #tpu.memory_space<vmem>>, %arg4: memref<1x32xf32, #tpu.memory_space<vmem>>, %arg5: memref<32x32xf32, #tpu.memory_space<vmem>>, %arg6: memref<1x32xf32, #tpu.memory_space<vmem>>, %arg7: memref<32x32xf32, #tpu.memory_space<vmem>>, %arg8: memref<1x32xf32, #tpu.memory_space<vmem>>, %arg9: memref<1x8x32xf32, #tpu.memory_space<vmem>>, %arg10: memref<1x8x32xf32, #tpu.memory_space<vmem>>, %arg11: memref<1x8x32xf32, #tpu.memory_space<vmem>>) attributes {dimension_semantics = [#tpu.dimension_semantics<parallel>, #tpu.dimension_semantics<parallel>], iteration_bounds = array<i64: 2, 1>, scalar_prefetch = 0 : i64, scratch_operands = 0 : i64, tpu.core_type = #tpu.core_type<tc>, window_params = [{transform_indices = @transform_0, window_bounds = array<i64: 1, 8, 32>}, {pipeline_mode = #tpu.pipeline_mode<synchronous>, transform_indices = @transform_1, window_bounds = array<i64: 1, 32>}, {pipeline_mode = #tpu.pipeline_mode<synchronous>, transform_indices = @transform_2, window_bounds = array<i64: 1, 32>}, {pipeline_mode = #tpu.pipeline_mode<synchronous>, transform_indices = @transform_3, window_bounds = array<i64: 32, 32>}, {pipeline_mode = #tpu.pipeline_mode<synchronous>, transform_indices = @transform_4, window_bounds = array<i64: 1, 32>}, {pipeline_mode = #tpu.pipeline_mode<synchronous>, transform_indices = @transform_5, window_bounds = array<i64: 32, 32>}, {pipeline_mode = #tpu.pipeline_mode<synchronous>, transform_indices = @transform_6, window_bounds = array<i64: 1, 32>}, {transform_indices = @transform_7, window_bounds = array<i64: 1, 8, 32>}, {transform_indices = @transform_8, window_bounds = array<i64: 1, 8, 32>}, {transform_indices = @transform_9, window_bounds = array<i64: 1, 8, 32>}]} {
    %c0 = arith.constant 0 : index
    %c0_0 = arith.constant 0 : index
    %c0_1 = arith.constant 0 : index
    %0 = vector.load %arg2[%c0, %c0_0, %c0_1] : memref<1x8x32xf32, #tpu.memory_space<vmem>>, vector<1x8x32xf32>
    %1 = vector.shape_cast %0 : vector<1x8x32xf32> to vector<8x32xf32>
    %cst = arith.constant dense<0.000000e+00> : vector<8xf32>
    %2 = vector.multi_reduction <add>, %1, %cst [1] : vector<8x32xf32> to vector<8xf32>
    %3 = vector.shape_cast %2 : vector<8xf32> to vector<8x1xf32>
    %cst_2 = arith.constant 3.200000e+01 : f32
    %4 = vector.broadcast %cst_2 : f32 to vector<8x1xf32>
    %5 = arith.divf %3, %4 : vector<8x1xf32>
    %6 = arith.mulf %1, %1 : vector<8x32xf32>
    %cst_3 = arith.constant dense<0.000000e+00> : vector<8xf32>
    %7 = vector.multi_reduction <add>, %6, %cst_3 [1] : vector<8x32xf32> to vector<8xf32>
    %8 = vector.shape_cast %7 : vector<8xf32> to vector<8x1xf32>
    %cst_4 = arith.constant 3.200000e+01 : f32
    %9 = vector.broadcast %cst_4 : f32 to vector<8x1xf32>
    %10 = arith.divf %8, %9 : vector<8x1xf32>
    %11 = arith.mulf %5, %5 : vector<8x1xf32>
    %12 = arith.subf %10, %11 : vector<8x1xf32>
    %13 = vector.broadcast %5 : vector<8x1xf32> to vector<8x32xf32>
    %14 = arith.subf %1, %13 : vector<8x32xf32>
    %cst_5 = arith.constant 9.99999974E-6 : f32
    %15 = vector.broadcast %cst_5 : f32 to vector<8x1xf32>
    %16 = arith.addf %12, %15 : vector<8x1xf32>
    %17 = math.rsqrt %16 : vector<8x1xf32>
    %18 = vector.broadcast %17 : vector<8x1xf32> to vector<8x32xf32>
    %19 = arith.mulf %14, %18 : vector<8x32xf32>
    %c0_6 = arith.constant 0 : index
    %c0_7 = arith.constant 0 : index
    %20 = vector.load %arg3[%c0_6, %c0_7] : memref<1x32xf32, #tpu.memory_space<vmem>>, vector<1x32xf32>
    %21 = vector.shape_cast %20 : vector<1x32xf32> to vector<32xf32>
    %22 = vector.shape_cast %21 : vector<32xf32> to vector<1x32xf32>
    %23 = vector.broadcast %22 : vector<1x32xf32> to vector<8x32xf32>
    %24 = arith.mulf %19, %23 : vector<8x32xf32>
    %c0_8 = arith.constant 0 : index
    %c0_9 = arith.constant 0 : index
    %25 = vector.load %arg4[%c0_8, %c0_9] : memref<1x32xf32, #tpu.memory_space<vmem>>, vector<1x32xf32>
    %26 = vector.shape_cast %25 : vector<1x32xf32> to vector<32xf32>
    %27 = vector.shape_cast %26 : vector<32xf32> to vector<1x32xf32>
    %28 = vector.broadcast %27 : vector<1x32xf32> to vector<8x32xf32>
    %29 = arith.addf %24, %28 : vector<8x32xf32>
    %c0_10 = arith.constant 0 : index
    %c0_11 = arith.constant 0 : index
    %30 = vector.load %arg5[%c0_10, %c0_11] : memref<32x32xf32, #tpu.memory_space<vmem>>, vector<32x32xf32>
    %cst_12 = arith.constant dense<0.000000e+00> : vector<8x32xf32>
    %31 = tpu.matmul %29, %30, %cst_12 {dimension_numbers = #tpu.dot_dimension_numbers<[1], [0], [0], [1], [0, 0, 1, 1], [], []>} : vector<8x32xf32>, vector<32x32xf32>, vector<8x32xf32> -> vector<8x32xf32>
    %c0_13 = arith.constant 0 : index
    %c0_14 = arith.constant 0 : index
    %32 = vector.load %arg6[%c0_13, %c0_14] : memref<1x32xf32, #tpu.memory_space<vmem>>, vector<1x32xf32>
    %33 = vector.shape_cast %32 : vector<1x32xf32> to vector<32xf32>
    %34 = vector.shape_cast %33 : vector<32xf32> to vector<1x32xf32>
    %35 = vector.broadcast %34 : vector<1x32xf32> to vector<8x32xf32>
    %36 = arith.addf %31, %35 : vector<8x32xf32>
    %c0_15 = arith.constant 0 : index
    %c0_16 = arith.constant 0 : index
    %37 = vector.load %arg7[%c0_15, %c0_16] : memref<32x32xf32, #tpu.memory_space<vmem>>, vector<32x32xf32>
    %cst_17 = arith.constant dense<0.000000e+00> : vector<8x32xf32>
    %38 = tpu.matmul %29, %37, %cst_17 {dimension_numbers = #tpu.dot_dimension_numbers<[1], [0], [0], [1], [0, 0, 1, 1], [], []>} : vector<8x32xf32>, vector<32x32xf32>, vector<8x32xf32> -> vector<8x32xf32>
    %c0_18 = arith.constant 0 : index
    %c0_19 = arith.constant 0 : index
    %39 = vector.load %arg8[%c0_18, %c0_19] : memref<1x32xf32, #tpu.memory_space<vmem>>, vector<1x32xf32>
    %40 = vector.shape_cast %39 : vector<1x32xf32> to vector<32xf32>
    %41 = vector.shape_cast %40 : vector<32xf32> to vector<1x32xf32>
    %42 = vector.broadcast %41 : vector<1x32xf32> to vector<8x32xf32>
    %43 = arith.addf %38, %42 : vector<8x32xf32>
    %c0_20 = arith.constant 0 : index
    %c0_21 = arith.constant 0 : index
    %c0_22 = arith.constant 0 : index
    %44 = vector.load %arg9[%c0_20, %c0_21, %c0_22] : memref<1x8x32xf32, #tpu.memory_space<vmem>>, vector<1x8x32xf32>
    %45 = vector.shape_cast %44 : vector<1x8x32xf32> to vector<8x32xf32>
    %46 = vector.shape_cast %36 : vector<8x32xf32> to vector<1x8x32xf32>
    tpu.vector_store %arg9[%c0_20, %c0_21, %c0_22], %46 {strides = array<i32>} : memref<1x8x32xf32, #tpu.memory_space<vmem>>, vector<1x8x32xf32>,
    %c0_23 = arith.constant 0 : index
    %c0_24 = arith.constant 0 : index
    %c0_25 = arith.constant 0 : index
    %47 = vector.load %arg10[%c0_23, %c0_24, %c0_25] : memref<1x8x32xf32, #tpu.memory_space<vmem>>, vector<1x8x32xf32>
    %48 = vector.shape_cast %47 : vector<1x8x32xf32> to vector<8x32xf32>
    %49 = vector.shape_cast %43 : vector<8x32xf32> to vector<1x8x32xf32>
    tpu.vector_store %arg10[%c0_23, %c0_24, %c0_25], %49 {strides = array<i32>} : memref<1x8x32xf32, #tpu.memory_space<vmem>>, vector<1x8x32xf32>,
    %c0_26 = arith.constant 0 : index
    %c0_27 = arith.constant 0 : index
    %c0_28 = arith.constant 0 : index
    %50 = vector.load %arg2[%c0_26, %c0_27, %c0_28] : memref<1x8x32xf32, #tpu.memory_space<vmem>>, vector<1x8x32xf32>
    %51 = vector.shape_cast %50 : vector<1x8x32xf32> to vector<8x32xf32>
    %c0_29 = arith.constant 0 : index
    %c0_30 = arith.constant 0 : index
    %c0_31 = arith.constant 0 : index
    %52 = vector.load %arg11[%c0_29, %c0_30, %c0_31] : memref<1x8x32xf32, #tpu.memory_space<vmem>>, vector<1x8x32xf32>
    %53 = vector.shape_cast %52 : vector<1x8x32xf32> to vector<8x32xf32>
    %54 = vector.shape_cast %51 : vector<8x32xf32> to vector<1x8x32xf32>
    tpu.vector_store %arg11[%c0_29, %c0_30, %c0_31], %54 {strides = array<i32>} : memref<1x8x32xf32, #tpu.memory_space<vmem>>, vector<1x8x32xf32>,
    return
  }
  func.func @transform_0(%arg0: i32, %arg1: i32) -> (i32, i32, i32) {
    %c0_i32 = arith.constant 0 : i32
    %c0_i32_0 = arith.constant 0 : i32
    return %arg0, %arg1, %c0_i32 : i32, i32, i32
  }
  func.func @transform_1(%arg0: i32, %arg1: i32) -> (i32, i32) {
    %c0_i32 = arith.constant 0 : i32
    %c0_i32_0 = arith.constant 0 : i32
    %c0_i32_1 = arith.constant 0 : i32
    return %c0_i32, %c0_i32_0 : i32, i32
  }
  func.func @transform_2(%arg0: i32, %arg1: i32) -> (i32, i32) {
    %c0_i32 = arith.constant 0 : i32
    %c0_i32_0 = arith.constant 0 : i32
    %c0_i32_1 = arith.constant 0 : i32
    return %c0_i32, %c0_i32_0 : i32, i32
  }
  func.func @transform_3(%arg0: i32, %arg1: i32) -> (i32, i32) {
    %c0_i32 = arith.constant 0 : i32
    %c0_i32_0 = arith.constant 0 : i32
    %c0_i32_1 = arith.constant 0 : i32
    return %c0_i32, %c0_i32_0 : i32, i32
  }
  func.func @transform_4(%arg0: i32, %arg1: i32) -> (i32, i32) {
    %c0_i32 = arith.constant 0 : i32
    %c0_i32_0 = arith.constant 0 : i32
    %c0_i32_1 = arith.constant 0 : i32
    return %c0_i32, %c0_i32_0 : i32, i32
  }
  func.func @transform_5(%arg0: i32, %arg1: i32) -> (i32, i32) {
    %c0_i32 = arith.constant 0 : i32
    %c0_i32_0 = arith.constant 0 : i32
    %c0_i32_1 = arith.constant 0 : i32
    return %c0_i32, %c0_i32_0 : i32, i32
  }
  func.func @transform_6(%arg0: i32, %arg1: i32) -> (i32, i32) {
    %c0_i32 = arith.constant 0 : i32
    %c0_i32_0 = arith.constant 0 : i32
    %c0_i32_1 = arith.constant 0 : i32
    return %c0_i32, %c0_i32_0 : i32, i32
  }
  func.func @transform_7(%arg0: i32, %arg1: i32) -> (i32, i32, i32) {
    %c0_i32 = arith.constant 0 : i32
    %c0_i32_0 = arith.constant 0 : i32
    return %arg0, %arg1, %c0_i32 : i32, i32, i32
  }
  func.func @transform_8(%arg0: i32, %arg1: i32) -> (i32, i32, i32) {
    %c0_i32 = arith.constant 0 : i32
    %c0_i32_0 = arith.constant 0 : i32
    return %arg0, %arg1, %c0_i32 : i32, i32, i32
  }
  func.func @transform_9(%arg0: i32, %arg1: i32) -> (i32, i32, i32) {
    %c0_i32 = arith.constant 0 : i32
    %c0_i32_0 = arith.constant 0 : i32
    return %arg0, %arg1, %c0_i32 : i32, i32, i32
  }
}

</mosaic_0001>

<llo_original>
// kernel: tpu_custom_call.1
$region0: #{tpu_custom_call.1}
  #allocation0 [shape = 'u32[]', space=smem, size = 0x4, offset = 0x4, fixed_abs, tag = 'smem constant byte address 0x4 - core index']
  #allocation1 [shape = 'u32[72,128]{1,0:T(1,128)}', space=vmem, size = 0x9000, scoped, tag = 'internal scratch']
  %s0 = inlined_call_operand.hbm [shape: f32[2,8,32], index: 0, kind: input, shape index: {}]
  %s1 = inlined_call_operand.hbm [shape: f32[1,32], index: 1, kind: input, shape index: {}]
  %s2 = inlined_call_operand.vmem [shape: f32[1,32], index: 2, kind: input, shape index: {}]
  %s3 = inlined_call_operand.hbm [shape: f32[32,32], index: 3, kind: input, shape index: {}]
  %s4 = inlined_call_operand.vmem [shape: f32[1,32], index: 4, kind: input, shape index: {}]
  %s5 = inlined_call_operand.hbm [shape: f32[32,32], index: 5, kind: input, shape index: {}]
  %s6 = inlined_call_operand.vmem [shape: f32[1,32], index: 6, kind: input, shape index: {}]
  %s7 = inlined_call_operand.hbm [shape: f32[2,8,32], index: 7, kind: output, shape index: {0}]
  %s8 = inlined_call_operand.hbm [shape: f32[2,8,32], index: 8, kind: output, shape index: {1}]
  %s9 = inlined_call_operand.hbm [shape: f32[2,8,32], index: 9, kind: output, shape index: {2}]
  %10 = xla_tuple %s7, %s8, %s9
  %s11 = sld [smem:[#allocation0]]
  $region93: #{tpu_custom_call.1} parent=0
    _
  %s13 = ssub.s32 1, %s11
  %s14 = scalar_select 0, %s13, %s11
  $region1: #{tpu_custom_call.1} parent=0
    #allocation2 [shape = 'u8[8192]{0}', space=vmem, size = 0x2000, scoped, tag = 'input window, operand 0']
    #allocation3 [shape = 's32[2]{0}', space=sflag, size = 0x8, scoped, tag = 'scoped memory for tpu_custom_call.1']
    #allocation4 [shape = 's32[2]{0}', space=sflag, size = 0x8, scoped, tag = 'scoped memory for tpu_custom_call.1']
    #allocation5 [shape = 'u8[512]{0}', space=vmem, size = 0x400, scoped, tag = 'input window, operand 1, single buffered']
    #allocation6 [shape = 's32[1]{0}', space=sflag, size = 0x4, scoped, tag = 'scoped memory for tpu_custom_call.1']
    #allocation7 [shape = 'u8[16384]{0}', space=vmem, size = 0x4000, scoped, tag = 'input window, operand 3, single buffered']
    #allocation8 [shape = 'u8[16384]{0}', space=vmem, size = 0x4000, scoped, tag = 'input window, operand 5, single buffered']
    #allocation9 [shape = 's32[1]{0}', space=sflag, size = 0x4, scoped, tag = 'scoped memory for tpu_custom_call.1']
    #allocation10 [shape = 'u8[8192]{0}', space=vmem, size = 0x2000, scoped, tag = 'output window, operand 0']
    #allocation11 [shape = 'u8[8192]{0}', space=vmem, size = 0x2000, scoped, tag = 'output window, operand 1']
    #allocation12 [shape = 's32[2]{0}', space=sflag, size = 0x8, scoped, tag = 'scoped memory for tpu_custom_call.1']
    #allocation13 [shape = 'u8[8192]{0}', space=vmem, size = 0x2000, scoped, tag = 'output window, operand 2']
    %15 = vsyncpa [#allocation3], 0
    %s16 = scalar_lea.sflag [#allocation3], 1
    %17 = vsyncpa %s16, 0
    %18 = vsyncpa [#allocation6], 0
    %19 = vsyncpa [#allocation9], 0
    %20 = vsyncpa [#allocation4], 0
    %s21 = scalar_lea.sflag [#allocation4], 1
    %22 = vsyncpa %s21, 0
    %23 = vsyncpa [#allocation12], 0
    %s24 = scalar_lea.sflag [#allocation12], 1
    %25 = vsyncpa %s24, 0
    loop: start=0, step=1, limit=4
    $region2: #{tpu_custom_call.1} parent=1 // loop_pre_header
      _
    $region3: #{tpu_custom_call.1} parent=1 // loop_header
      %s27 = sphi 0, %s31
      %p28 = scmp.ge.s32.totalorder %s27, 4
      %s34 = sphi 0, %s46
      %s35 = sphi 0, %s42
      %s36 = sphi 0, %s34
      %s37 = sphi 0, %s35
      %s38 = sphi 0, %s36
      %s39 = sphi 0, %s37
      %s51 = sphi 0, %s53
      %s54 = sphi 0, %s51
      %s55 = sphi 0, %s54
      %s71 = sphi 0, %s55
      %s75 = sphi 0, %s75
      %s77 = sphi 0, %s75
      %s78 = sphi 0, %s77
      %s92 = sphi 0, %s78
      %s96 = sphi 0, %s96
      %s98 = sphi 0, %s96
      %s99 = sphi 0, %s98
      %s113 = sphi 0, %s99
      %s117 = sphi 0, %s117
      %s119 = sphi 0, %s117
      %s120 = sphi 0, %s119
      %s134 = sphi 0, %s120
      %s138 = sphi 0, %s138
      %s140 = sphi 0, %s138
      %s141 = sphi 0, %s140
      %s155 = sphi 0, %s141
      %s159 = sphi 0, %s159
      %s161 = sphi 0, %s159
      %s162 = sphi 0, %s161
      %s176 = sphi 0, %s162
      %s180 = sphi 0, %s180
      %s182 = sphi 0, %s180
      %s183 = sphi 0, %s182
      %s197 = sphi 0, %s183
      %s205 = sphi 0, %s207
      %s208 = sphi 0, %s205
      %s209 = sphi 0, %s208
      %s225 = sphi 0, %s209
      %s233 = sphi 0, %s235
      %s236 = sphi 0, %s233
      %s237 = sphi 0, %s236
      %s253 = sphi 0, %s237
      %s261 = sphi 0, %s263
      %s264 = sphi 0, %s261
      %s265 = sphi 0, %s264
      %s281 = sphi 0, %s265
    $region4: #{tpu_custom_call.1} parent=1 // loop_header_branch
      %30 = sbr.rel (%p28) target = $region8
    $region5: #{tpu_custom_call.1} parent=1 // loop_body
      %s32 = ssub.s32 %s27, 1
      %s33 = ssub.s32 %s27, 2
      %s40 = sadd.s32 1, %s35
      %p41 = scmp.ge.s32.totalorder %s40, 1
      %s42 = scalar_select %p41, 0, %s40
      %s43 = sadd.s32 1, %s34
      %s44 = scalar_select %p41, %s43, %s34
      %p45 = scmp.ge.s32.totalorder %s44, 2
      %s46 = scalar_select %p45, 0, %s44
      %s47 = ssub.s32 %s34, %s46
      %s48 = ssub.s32 %s35, %s42
      %s49 = sor.u32 %s47, %s48
      %p50 = scmp.eq.s32.totalorder %s49, 0
      %s52 = sadd.s32 %s51, 1
      %s53 = scalar_select %p50, %s51, %s52
      %p56 = pneg %p50
      %p57 = scmp.eq.s32.totalorder %s27, 1
      %p58 = por %p56, %p57
      %p59 = scmp.ne.s32.totalorder %s51, %s54
      %p60 = scmp.eq.s32.totalorder %s27, 0
      %p61 = por %p59, %p60
      %p62 = scmp.ne.s32.totalorder %s51, %s54
      %p63 = scmp.eq.s32.totalorder %s32, 1
      %p64 = por %p62, %p63
      %p65 = scmp.ne.s32.totalorder %s54, %s55
      %p66 = scmp.eq.s32.totalorder %s32, 0
      %p67 = por %p65, %p66
      %p68 = scmp.ne.s32.totalorder %s54, %s55
      %p69 = scmp.eq.s32.totalorder %s33, 1
      %p70 = por %p68, %p69
      %p72 = scmp.ne.s32.totalorder %s55, %s71
      %p73 = scmp.eq.s32.totalorder %s33, 0
      %p74 = por %p72, %p73
      %s76 = sadd.s32 %s75, 1
      %p79 = scmp.eq.s32.totalorder %s27, 1
      %p80 = scmp.ne.s32.totalorder %s75, %s77
      %p81 = scmp.eq.s32.totalorder %s27, 0
      %p82 = por %p80, %p81
      %p83 = scmp.ne.s32.totalorder %s75, %s77
      %p84 = scmp.eq.s32.totalorder %s32, 1
      %p85 = por %p83, %p84
      %p86 = scmp.ne.s32.totalorder %s77, %s78
      %p87 = scmp.eq.s32.totalorder %s32, 0
      %p88 = por %p86, %p87
      %p89 = scmp.ne.s32.totalorder %s77, %s78
      %p90 = scmp.eq.s32.totalorder %s33, 1
      %p91 = por %p89, %p90
      %p93 = scmp.ne.s32.totalorder %s78, %s92
      %p94 = scmp.eq.s32.totalorder %s33, 0
      %p95 = por %p93, %p94
      %s97 = sadd.s32 %s96, 1
      %p100 = scmp.eq.s32.totalorder %s27, 1
      %p101 = scmp.ne.s32.totalorder %s96, %s98
      %p102 = scmp.eq.s32.totalorder %s27, 0
      %p103 = por %p101, %p102
      %p104 = scmp.ne.s32.totalorder %s96, %s98
      %p105 = scmp.eq.s32.totalorder %s32, 1
      %p106 = por %p104, %p105
      %p107 = scmp.ne.s32.totalorder %s98, %s99
      %p108 = scmp.eq.s32.totalorder %s32, 0
      %p109 = por %p107, %p108
      %p110 = scmp.ne.s32.totalorder %s98, %s99
      %p111 = scmp.eq.s32.totalorder %s33, 1
      %p112 = por %p110, %p111
      %p114 = scmp.ne.s32.totalorder %s99, %s113
      %p115 = scmp.eq.s32.totalorder %s33, 0
      %p116 = por %p114, %p115
      %s118 = sadd.s32 %s117, 1
      %p121 = scmp.eq.s32.totalorder %s27, 1
      %p122 = scmp.ne.s32.totalorder %s117, %s119
      %p123 = scmp.eq.s32.totalorder %s27, 0
      %p124 = por %p122, %p123
      %p125 = scmp.ne.s32.totalorder %s117, %s119
      %p126 = scmp.eq.s32.totalorder %s32, 1
      %p127 = por %p125, %p126
      %p128 = scmp.ne.s32.totalorder %s119, %s120
      %p129 = scmp.eq.s32.totalorder %s32, 0
      %p130 = por %p128, %p129
      %p131 = scmp.ne.s32.totalorder %s119, %s120
      %p132 = scmp.eq.s32.totalorder %s33, 1
      %p133 = por %p131, %p132
      %p135 = scmp.ne.s32.totalorder %s120, %s134
      %p136 = scmp.eq.s32.totalorder %s33, 0
      %p137 = por %p135, %p136
      %s139 = sadd.s32 %s138, 1
      %p142 = scmp.eq.s32.totalorder %s27, 1
      %p143 = scmp.ne.s32.totalorder %s138, %s140
      %p144 = scmp.eq.s32.totalorder %s27, 0
      %p145 = por %p143, %p144
      %p146 = scmp.ne.s32.totalorder %s138, %s140
      %p147 = scmp.eq.s32.totalorder %s32, 1
      %p148 = por %p146, %p147
      %p149 = scmp.ne.s32.totalorder %s140, %s141
      %p150 = scmp.eq.s32.totalorder %s32, 0
      %p151 = por %p149, %p150
      %p152 = scmp.ne.s32.totalorder %s140, %s141
      %p153 = scmp.eq.s32.totalorder %s33, 1
      %p154 = por %p152, %p153
      %p156 = scmp.ne.s32.totalorder %s141, %s155
      %p157 = scmp.eq.s32.totalorder %s33, 0
      %p158 = por %p156, %p157
      %s160 = sadd.s32 %s159, 1
      %p163 = scmp.eq.s32.totalorder %s27, 1
      %p164 = scmp.ne.s32.totalorder %s159, %s161
      %p165 = scmp.eq.s32.totalorder %s27, 0
      %p166 = por %p164, %p165
      %p167 = scmp.ne.s32.totalorder %s159, %s161
      %p168 = scmp.eq.s32.totalorder %s32, 1
      %p169 = por %p167, %p168
      %p170 = scmp.ne.s32.totalorder %s161, %s162
      %p171 = scmp.eq.s32.totalorder %s32, 0
      %p172 = por %p170, %p171
      %p173 = scmp.ne.s32.totalorder %s161, %s162
      %p174 = scmp.eq.s32.totalorder %s33, 1
      %p175 = por %p173, %p174
      %p177 = scmp.ne.s32.totalorder %s162, %s176
      %p178 = scmp.eq.s32.totalorder %s33, 0
      %p179 = por %p177, %p178
      %s181 = sadd.s32 %s180, 1
      %p184 = scmp.eq.s32.totalorder %s27, 1
      %p185 = scmp.ne.s32.totalorder %s180, %s182
      %p186 = scmp.eq.s32.totalorder %s27, 0
      %p187 = por %p185, %p186
      %p188 = scmp.ne.s32.totalorder %s180, %s182
      %p189 = scmp.eq.s32.totalorder %s32, 1
      %p190 = por %p188, %p189
      %p191 = scmp.ne.s32.totalorder %s182, %s183
      %p192 = scmp.eq.s32.totalorder %s32, 0
      %p193 = por %p191, %p192
      %p194 = scmp.ne.s32.totalorder %s182, %s183
      %p195 = scmp.eq.s32.totalorder %s33, 1
      %p196 = por %p194, %p195
      %p198 = scmp.ne.s32.totalorder %s183, %s197
      %p199 = scmp.eq.s32.totalorder %s33, 0
      %p200 = por %p198, %p199
      %s201 = ssub.s32 %s34, %s46
      %s202 = ssub.s32 %s35, %s42
      %s203 = sor.u32 %s201, %s202
      %p204 = scmp.eq.s32.totalorder %s203, 0
      %s206 = sadd.s32 %s205, 1
      %s207 = scalar_select %p204, %s205, %s206
      %p210 = pneg %p204
      %p211 = scmp.eq.s32.totalorder %s27, 1
      %p212 = por %p210, %p211
      %p213 = scmp.ne.s32.totalorder %s205, %s208
      %p214 = scmp.eq.s32.totalorder %s27, 0
      %p215 = por %p213, %p214
      %p216 = scmp.ne.s32.totalorder %s205, %s208
      %p217 = scmp.eq.s32.totalorder %s32, 1
      %p218 = por %p216, %p217
      %p219 = scmp.ne.s32.totalorder %s208, %s209
      %p220 = scmp.eq.s32.totalorder %s32, 0
      %p221 = por %p219, %p220
      %p222 = scmp.ne.s32.totalorder %s208, %s209
      %p223 = scmp.eq.s32.totalorder %s33, 1
      %p224 = por %p222, %p223
      %p226 = scmp.ne.s32.totalorder %s209, %s225
      %p227 = scmp.eq.s32.totalorder %s33, 0
      %p228 = por %p226, %p227
      %s229 = ssub.s32 %s34, %s46
      %s230 = ssub.s32 %s35, %s42
      %s231 = sor.u32 %s229, %s230
      %p232 = scmp.eq.s32.totalorder %s231, 0
      %s234 = sadd.s32 %s233, 1
      %s235 = scalar_select %p232, %s233, %s234
      %p238 = pneg %p232
      %p239 = scmp.eq.s32.totalorder %s27, 1
      %p240 = por %p238, %p239
      %p241 = scmp.ne.s32.totalorder %s233, %s236
      %p242 = scmp.eq.s32.totalorder %s27, 0
      %p243 = por %p241, %p242
      %p244 = scmp.ne.s32.totalorder %s233, %s236
      %p245 = scmp.eq.s32.totalorder %s32, 1
      %p246 = por %p244, %p245
      %p247 = scmp.ne.s32.totalorder %s236, %s237
      %p248 = scmp.eq.s32.totalorder %s32, 0
      %p249 = por %p247, %p248
      %p250 = scmp.ne.s32.totalorder %s236, %s237
      %p251 = scmp.eq.s32.totalorder %s33, 1
      %p252 = por %p250, %p251
      %p254 = scmp.ne.s32.totalorder %s237, %s253
      %p255 = scmp.eq.s32.totalorder %s33, 0
      %p256 = por %p254, %p255
      %s257 = ssub.s32 %s34, %s46
      %s258 = ssub.s32 %s35, %s42
      %s259 = sor.u32 %s257, %s258
      %p260 = scmp.eq.s32.totalorder %s259, 0
      %s262 = sadd.s32 %s261, 1
      %s263 = scalar_select %p260, %s261, %s262
      %p266 = pneg %p260
      %p267 = scmp.eq.s32.totalorder %s27, 1
      %p268 = por %p266, %p267
      %p269 = scmp.ne.s32.totalorder %s261, %s264
      %p270 = scmp.eq.s32.totalorder %s27, 0
      %p271 = por %p269, %p270
      %p272 = scmp.ne.s32.totalorder %s261, %s264
      %p273 = scmp.eq.s32.totalorder %s32, 1
      %p274 = por %p272, %p273
      %p275 = scmp.ne.s32.totalorder %s264, %s265
      %p276 = scmp.eq.s32.totalorder %s32, 0
      %p277 = por %p275, %p276
      %p278 = scmp.ne.s32.totalorder %s264, %s265
      %p279 = scmp.eq.s32.totalorder %s33, 1
      %p280 = por %p278, %p279
      %p282 = scmp.ne.s32.totalorder %s265, %s281
      %p283 = scmp.eq.s32.totalorder %s33, 0
      %p284 = por %p282, %p283
      %p285 = scmp.le.s32.totalorder 1, %s27
      %p286 = scmp.lt.s32.totalorder %s27, 3
      %p287 = pnand %p285, %p286
      %p288 = pneg %p287
      // Predicated region
      $region9: #{tpu_custom_call.1} parent=5 // pred_check
        _
      $region10: #{tpu_custom_call.1} parent=5 // pred_check_branch
        %290 = sbr.rel (%p287) target = $region12
      $region11: #{tpu_custom_call.1} parent=5 // pred_region
        %s291 = ssub.s32 %s27, 1
        // Predicated region
        $region13: #{tpu_custom_call.1} parent=11 // pred_check
          %p292 = pneg %p88
        $region14: #{tpu_custom_call.1} parent=11 // pred_check_branch
          %294 = sbr.rel (%p292) target = $region16
        $region15: #{tpu_custom_call.1} parent=11 // pred_region
          %296 = vsyncadd [#allocation6], 0
          %s298 = sshll.u32 %s1, 4
          %s299 = int_to_ptr.hbm [resolvable:$true] %s298
          %s300 = sshll.u32 [#allocation5], 4
          %s301 = int_to_ptr.vmem [resolvable:$true] %s300
          %303 = dma.hbm_to_vmem [thread:$0]  %s299, 16, %s301, [#allocation6]
        $region16: #{tpu_custom_call.1} parent=11 // pred_fallthru
          _
        // Predicated region
        $region17: #{tpu_custom_call.1} parent=11 // pred_check
          %p304 = pneg %p109
        $region18: #{tpu_custom_call.1} parent=11 // pred_check_branch
          %306 = sbr.rel (%p304) target = $region20
        $region19: #{tpu_custom_call.1} parent=11 // pred_region
          _
        $region20: #{tpu_custom_call.1} parent=11 // pred_fallthru
          _
        // Predicated region
        $region21: #{tpu_custom_call.1} parent=11 // pred_check
          %p307 = pneg %p130
        $region22: #{tpu_custom_call.1} parent=11 // pred_check_branch
          %309 = sbr.rel (%p307) target = $region24
        $region23: #{tpu_custom_call.1} parent=11 // pred_region
          %311 = vsyncadd [#allocation6], 0
          %s312 = sshll.u32 %s3, 4
          %s313 = int_to_ptr.hbm [resolvable:$true] %s312
          %s314 = sshll.u32 [#allocation7], 4
          %s315 = int_to_ptr.vmem [resolvable:$true] %s314
          %320 = dma.hbm_to_vmem [thread:$0]  %s313, 512, %s315, [#allocation6], 128, 128, 8
        $region24: #{tpu_custom_call.1} parent=11 // pred_fallthru
          _
        // Predicated region
        $region25: #{tpu_custom_call.1} parent=11 // pred_check
          %p321 = pneg %p151
        $region26: #{tpu_custom_call.1} parent=11 // pred_check_branch
          %323 = sbr.rel (%p321) target = $region28
        $region27: #{tpu_custom_call.1} parent=11 // pred_region
          _
        $region28: #{tpu_custom_call.1} parent=11 // pred_fallthru
          _
        // Predicated region
        $region29: #{tpu_custom_call.1} parent=11 // pred_check
          %p324 = pneg %p172
        $region30: #{tpu_custom_call.1} parent=11 // pred_check_branch
          %326 = sbr.rel (%p324) target = $region32
        $region31: #{tpu_custom_call.1} parent=11 // pred_region
          %328 = vsyncadd [#allocation9], 0
          %s329 = sshll.u32 %s5, 4
          %s330 = int_to_ptr.hbm [resolvable:$true] %s329
          %s331 = sshll.u32 [#allocation8], 4
          %s332 = int_to_ptr.vmem [resolvable:$true] %s331
          %337 = dma.hbm_to_vmem [thread:$0]  %s330, 512, %s332, [#allocation9], 128, 128, 8
        $region32: #{tpu_custom_call.1} parent=11 // pred_fallthru
          _
        // Predicated region
        $region33: #{tpu_custom_call.1} parent=11 // pred_check
          %p338 = pneg %p193
        $region34: #{tpu_custom_call.1} parent=11 // pred_check_branch
          %340 = sbr.rel (%p338) target = $region36
        $region35: #{tpu_custom_call.1} parent=11 // pred_region
          _
        $region36: #{tpu_custom_call.1} parent=11 // pred_fallthru
          _
      $region12: #{tpu_custom_call.1} parent=5 // pred_fallthru
        _
      %p341 = scmp.lt.s32.totalorder %s27, 2
      // Predicated region
      $region37: #{tpu_custom_call.1} parent=5 // pred_check
        %p342 = pneg %p341
      $region38: #{tpu_custom_call.1} parent=5 // pred_check_branch
        %344 = sbr.rel (%p342) target = $region40
      $region39: #{tpu_custom_call.1} parent=5 // pred_region
        // Predicated region
        $region41: #{tpu_custom_call.1} parent=39 // pred_check
          %p345 = pneg %p61
        $region42: #{tpu_custom_call.1} parent=39 // pred_check_branch
          %347 = sbr.rel (%p345) target = $region44
        $region43: #{tpu_custom_call.1} parent=39 // pred_region
          %s348 = sand.u32 %s51, 1
          %s349 = scalar_lea.sflag [#allocation3], %s348
          %s350 = sand.u32 %s51, 1
          %s351 = smul.addr %s350, 8
          %s352 = scalar_lea.vmem [#allocation2], %s351
          %354 = vsyncadd %s349, 0
          %s355 = sadd.s32 %s35, %s34
          %s356 = smul.addr %s355, 8
          %s357 = scalar_lea.hbm %s0, %s356
          %s359 = sshll.u32 %s357, 4
          %s360 = int_to_ptr.hbm [resolvable:$true] %s359
          %s361 = sshll.u32 %s352, 4
          %s362 = int_to_ptr.vmem [resolvable:$true] %s361
          %364 = dma.hbm_to_vmem [thread:$0]  %s360, 128, %s362, %s349
        $region44: #{tpu_custom_call.1} parent=39 // pred_fallthru
          _
      $region40: #{tpu_custom_call.1} parent=5 // pred_fallthru
        _
      %p365 = scmp.le.s32.totalorder 1, %s27
      %p366 = scmp.lt.s32.totalorder %s27, 3
      %p367 = pnand %p365, %p366
      %p368 = pneg %p367
      // Predicated region
      $region45: #{tpu_custom_call.1} parent=5 // pred_check
        _
      $region46: #{tpu_custom_call.1} parent=5 // pred_check_branch
        %370 = sbr.rel (%p367) target = $region48
      $region47: #{tpu_custom_call.1} parent=5 // pred_region
        %s371 = ssub.s32 %s27, 1
        %s372 = sand.u32 %s54, 1
        %s373 = scalar_lea.sflag [#allocation3], %s372
        %s374 = sand.u32 %s54, 1
        %s375 = smul.addr %s374, 8
        %s376 = scalar_lea.vmem [#allocation2], %s375
        // Predicated region
        $region49: #{tpu_custom_call.1} parent=47 // pred_check
          %p377 = pneg %p67
        $region50: #{tpu_custom_call.1} parent=47 // pred_check_branch
          %379 = sbr.rel (%p377) target = $region52
        $region51: #{tpu_custom_call.1} parent=47 // pred_region
          %381 = dma.done %s373, 128
        $region52: #{tpu_custom_call.1} parent=47 // pred_fallthru
          _
        // Predicated region
        $region53: #{tpu_custom_call.1} parent=47 // pred_check
          %p382 = pneg %p88
        $region54: #{tpu_custom_call.1} parent=47 // pred_check_branch
          %384 = sbr.rel (%p382) target = $region56
        $region55: #{tpu_custom_call.1} parent=47 // pred_region
          %386 = dma.done [#allocation6], 16
        $region56: #{tpu_custom_call.1} parent=47 // pred_fallthru
          _
        // Predicated region
        $region57: #{tpu_custom_call.1} parent=47 // pred_check
          %p387 = pneg %p130
        $region58: #{tpu_custom_call.1} parent=47 // pred_check_branch
          %389 = sbr.rel (%p387) target = $region60
        $region59: #{tpu_custom_call.1} parent=47 // pred_region
          %391 = dma.done [#allocation6], 512
        $region60: #{tpu_custom_call.1} parent=47 // pred_fallthru
          _
        // Predicated region
        $region61: #{tpu_custom_call.1} parent=47 // pred_check
          %p392 = pneg %p172
        $region62: #{tpu_custom_call.1} parent=47 // pred_check_branch
          %394 = sbr.rel (%p392) target = $region64
        $region63: #{tpu_custom_call.1} parent=47 // pred_region
          %396 = dma.done [#allocation9], 512
        $region64: #{tpu_custom_call.1} parent=47 // pred_fallthru
          _
        %s397 = sand.u32 %s54, 1
        %s398 = scalar_lea.sflag [#allocation3], %s397
        %s399 = sand.u32 %s54, 1
        %s400 = smul.addr %s399, 8
        %s401 = scalar_lea.vmem [#allocation2], %s400
        %p402 = pneg %p67
        %p403 = pneg %p64
        %p404 = pneg %p88
        %p405 = pneg %p85
        %p406 = pneg %p109
        %p407 = pneg %p106
        %p408 = pneg %p130
        %p409 = pneg %p127
        %p410 = pneg %p151
        %p411 = pneg %p148
        %p412 = pneg %p172
        %p413 = pneg %p169
        %p414 = pneg %p193
        %p415 = pneg %p190
        %p416 = pneg %p221
        %p417 = pneg %p218
        %s418 = sand.u32 %s208, 1
        %s419 = scalar_lea.sflag [#allocation4], %s418
        %s420 = sand.u32 %s208, 1
        %s421 = smul.addr %s420, 8
        %s422 = scalar_lea.vmem [#allocation10], %s421
        %p423 = pneg %p249
        %p424 = pneg %p246
        %s425 = sand.u32 %s32, 1
        %s426 = scalar_lea.sflag [#allocation12], %s425
        %s427 = sand.u32 %s236, 1
        %s428 = smul.addr %s427, 8
        %s429 = scalar_lea.vmem [#allocation11], %s428
        %p430 = pneg %p277
        %p431 = pneg %p274
        %s432 = sand.u32 %s32, 1
        %s433 = scalar_lea.sflag [#allocation12], %s432
        %s434 = sand.u32 %s264, 1
        %s435 = smul.addr %s434, 8
        %s436 = scalar_lea.vmem [#allocation13], %s435
        %v437 = vld [vmem:[%s376] sm:$0xff]
        %vm438 = vcmask 261120
        %v439 = vsel %vm438, %v437, 0.0
        %440 = vadd.xlane.f32.xlu0 %v439
        %v441 = vpop.xlane.xlu0 %440
        %v442 = vrcp.pop 32.0
        %v443 = vmul.f32 32.0, %v442
        %v444 = vsub.f32 1.0, %v443
        %v445 = vmul.f32 %v442, %v444
        %v446 = vadd.f32 %v442, %v445
        %vm447 = vweird.f32 %v442
        %v448 = vsel %vm447, %v442, %v446
        %v449 = vmul.f32 %v441, %v448
        %v450 = vmul.f32 %v437, %v437
        %v451 = vsel %vm438, %v450, 0.0
        %452 = vadd.xlane.f32.xlu0 %v451
        %v453 = vpop.xlane.xlu0 %452
        %v454 = vmul.f32 %v453, %v448
        %v455 = vmul.f32 %v449, %v449
        %v456 = vsub.f32 %v454, %v455
        %v457 = vsub.f32 %v437, %v449
        %v458 = vadd.f32 %v456, 1e-05
        %v459 = vrsqrt.pop %v458
        %v460 = vmul.f32 %v459, %v458
        %v461 = vmul.f32 %v460, %v459
        %v462 = vmul.f32 0.5, %v461
        %v463 = vsub.f32 1.5, %v462
        %v464 = vmul.f32 %v459, %v463
        %vm465 = vweird.f32 %v458
        %vm466 = vweird.f32 %v459
        %vm467 = vmor %vm465, %vm466
        %v468 = vsel %vm467, %v459, %v464
        %v469 = vmul.f32 %v457, %v468
        %v470 = vld [vmem:[#allocation5] sm:$0x1]
        %v472 = vperm.slane %v470, 0
        %v474 = vmul.f32 %v469, %v472
        %v475 = vld [vmem:[%s2] sm:$0x1]
        %v477 = vperm.slane %v475, 0
        %v479 = vadd.f32 %v474, %v477
        %v480 = vld [vmem:[#allocation7] sm:$0xff]
        %v481 = vld [vmem:[#allocation7 + $0x8] sm:$0xff]
        %v482 = vld [vmem:[#allocation7 + $0x10] sm:$0xff]
        %v483 = vld [vmem:[#allocation7 + $0x18] sm:$0xff]
        %v484 = vld [vmem:[%s4] sm:$0x1]
        %v486 = vperm.slane %v484, 0
        %v489 = vsel %vm438, %v479, 0
        %491 = vmatpush.msra.mxu0 0.0
        %492 = vmatpush.msra.mxu0 0.0
        %493 = vmatpush.msra.mxu0 0.0
        %494 = vmatpush.msra.mxu0 0.0
        %495 = vmatpush.msra.mxu0 0.0
        %496 = vmatpush.msra.mxu0 0.0
        %497 = vmatpush.msra.mxu0 0.0
        %498 = vmatpush.msra.mxu0 0.0
        %499 = vmatpush.msra.mxu0 0.0
        %500 = vmatpush.msra.mxu0 0.0
        %501 = vmatpush.msra.mxu0 0.0
        %502 = vmatpush.msra.mxu0 0.0
        %503 = vmatpush.msra.mxu0 %v483
        %504 = vmatpush.msra.mxu0 %v482
        %505 = vmatpush.msra.mxu0 %v481
        %506 = vmatpush.msra.mxu0 %v480
        %507 = vmatmul.f32.gmra.mxu0 %v489
        %v508 = vpop.f32.mrf.mxu0
        %v509 = vadd.f32 %v486, %v508
        %510 = vdwg.mxu0
        %v511 = vld [vmem:[#allocation8] sm:$0xff]
        %v512 = vld [vmem:[#allocation8 + $0x8] sm:$0xff]
        %v513 = vld [vmem:[#allocation8 + $0x10] sm:$0xff]
        %v514 = vld [vmem:[#allocation8 + $0x18] sm:$0xff]
        %v515 = vld [vmem:[%s6] sm:$0x1]
        %v517 = vperm.slane %v515, 0
        %519 = vmatpush.msra.mxu0 0.0
        %520 = vmatpush.msra.mxu0 0.0
        %521 = vmatpush.msra.mxu0 0.0
        %522 = vmatpush.msra.mxu0 0.0
        %523 = vmatpush.msra.mxu0 0.0
        %524 = vmatpush.msra.mxu0 0.0
        %525 = vmatpush.msra.mxu0 0.0
        %526 = vmatpush.msra.mxu0 0.0
        %527 = vmatpush.msra.mxu0 0.0
        %528 = vmatpush.msra.mxu0 0.0
        %529 = vmatpush.msra.mxu0 0.0
        %530 = vmatpush.msra.mxu0 0.0
        %531 = vmatpush.msra.mxu0 %v514
        %532 = vmatpush.msra.mxu0 %v513
        %533 = vmatpush.msra.mxu0 %v512
        %534 = vmatpush.msra.mxu0 %v511
        %535 = vmatmul.f32.gmra.mxu0 %v489
        %v536 = vpop.f32.mrf.mxu0
        %v537 = vadd.f32 %v517, %v536
        %538 = vdwg.mxu0
        %539 = vst.msk [vmem:[%s422] sm:$0xff] %vm438, %v509
        %540 = vst.msk [vmem:[%s429] sm:$0xff] %vm438, %v537
        %v541 = vld [vmem:[%s376] sm:$0xff]
        %542 = vst.msk [vmem:[%s436] sm:$0xff] %vm438, %v541
        %s543 = sand.u32 %s208, 1
        %s544 = scalar_lea.sflag [#allocation4], %s543
        %s545 = sand.u32 %s208, 1
        %s546 = smul.addr %s545, 8
        %s547 = scalar_lea.vmem [#allocation10], %s546
        %s548 = sand.u32 %s32, 1
        %s549 = scalar_lea.sflag [#allocation12], %s548
        %s550 = sand.u32 %s236, 1
        %s551 = smul.addr %s550, 8
        %s552 = scalar_lea.vmem [#allocation11], %s551
        %s553 = sand.u32 %s32, 1
        %s554 = scalar_lea.sflag [#allocation12], %s553
        %s555 = sand.u32 %s264, 1
        %s556 = smul.addr %s555, 8
        %s557 = scalar_lea.vmem [#allocation13], %s556
        // Predicated region
        $region65: #{tpu_custom_call.1} parent=47 // pred_check
          %p558 = pneg %p218
        $region66: #{tpu_custom_call.1} parent=47 // pred_check_branch
          %560 = sbr.rel (%p558) target = $region68
        $region67: #{tpu_custom_call.1} parent=47 // pred_region
          %562 = vsyncadd %s544, 0
          %s563 = sadd.s32 %s37, %s36
          %s564 = smul.addr %s563, 8
          %s565 = scalar_lea.hbm %s7, %s564
          %s567 = sshll.u32 %s547, 4
          %s568 = int_to_ptr.vmem [resolvable:$true] %s567
          %s569 = sshll.u32 %s565, 4
          %s570 = int_to_ptr.hbm [resolvable:$true] %s569
          %572 = dma.vmem_to_hbm [thread:$0]  %s568, 128, %s570, %s544
        $region68: #{tpu_custom_call.1} parent=47 // pred_fallthru
          _
        // Predicated region
        $region69: #{tpu_custom_call.1} parent=47 // pred_check
          %p573 = pneg %p246
        $region70: #{tpu_custom_call.1} parent=47 // pred_check_branch
          %575 = sbr.rel (%p573) target = $region72
        $region71: #{tpu_custom_call.1} parent=47 // pred_region
          %577 = vsyncadd %s549, 0
          %s578 = sadd.s32 %s37, %s36
          %s579 = smul.addr %s578, 8
          %s580 = scalar_lea.hbm %s8, %s579
          %s582 = sshll.u32 %s552, 4
          %s583 = int_to_ptr.vmem [resolvable:$true] %s582
          %s584 = sshll.u32 %s580, 4
          %s585 = int_to_ptr.hbm [resolvable:$true] %s584
          %587 = dma.vmem_to_hbm [thread:$0]  %s583, 128, %s585, %s549
        $region72: #{tpu_custom_call.1} parent=47 // pred_fallthru
          _
        // Predicated region
        $region73: #{tpu_custom_call.1} parent=47 // pred_check
          %p588 = pneg %p274
        $region74: #{tpu_custom_call.1} parent=47 // pred_check_branch
          %590 = sbr.rel (%p588) target = $region76
        $region75: #{tpu_custom_call.1} parent=47 // pred_region
          %592 = vsyncadd %s554, 0
          %s593 = sadd.s32 %s37, %s36
          %s594 = smul.addr %s593, 8
          %s595 = scalar_lea.hbm %s9, %s594
          %s597 = sshll.u32 %s557, 4
          %s598 = int_to_ptr.vmem [resolvable:$true] %s597
          %s599 = sshll.u32 %s595, 4
          %s600 = int_to_ptr.hbm [resolvable:$true] %s599
          %602 = dma.vmem_to_hbm [thread:$0]  %s598, 128, %s600, %s554
        $region76: #{tpu_custom_call.1} parent=47 // pred_fallthru
          _
      $region48: #{tpu_custom_call.1} parent=5 // pred_fallthru
        _
      %p603 = scmp.le.s32.totalorder 2, %s27
      // Predicated region
      $region77: #{tpu_custom_call.1} parent=5 // pred_check
        %p604 = pneg %p603
      $region78: #{tpu_custom_call.1} parent=5 // pred_check_branch
        %606 = sbr.rel (%p604) target = $region80
      $region79: #{tpu_custom_call.1} parent=5 // pred_region
        %s607 = ssub.s32 %s27, 2
        // Predicated region
        $region81: #{tpu_custom_call.1} parent=79 // pred_check
          %p608 = pneg %p224
        $region82: #{tpu_custom_call.1} parent=79 // pred_check_branch
          %610 = sbr.rel (%p608) target = $region84
        $region83: #{tpu_custom_call.1} parent=79 // pred_region
          %s611 = sand.u32 %s209, 1
          %s612 = scalar_lea.sflag [#allocation4], %s611
          %s613 = sand.u32 %s209, 1
          %s614 = smul.addr %s613, 8
          %s615 = scalar_lea.vmem [#allocation10], %s614
          %617 = dma.done %s612, 128
        $region84: #{tpu_custom_call.1} parent=79 // pred_fallthru
          _
        // Predicated region
        $region85: #{tpu_custom_call.1} parent=79 // pred_check
          %p618 = pneg %p252
        $region86: #{tpu_custom_call.1} parent=79 // pred_check_branch
          %620 = sbr.rel (%p618) target = $region88
        $region87: #{tpu_custom_call.1} parent=79 // pred_region
          %s621 = sand.u32 %s33, 1
          %s622 = scalar_lea.sflag [#allocation12], %s621
          %s623 = sand.u32 %s237, 1
          %s624 = smul.addr %s623, 8
          %s625 = scalar_lea.vmem [#allocation11], %s624
          %627 = dma.done %s622, 128
        $region88: #{tpu_custom_call.1} parent=79 // pred_fallthru
          _
        // Predicated region
        $region89: #{tpu_custom_call.1} parent=79 // pred_check
          %p628 = pneg %p280
        $region90: #{tpu_custom_call.1} parent=79 // pred_check_branch
          %630 = sbr.rel (%p628) target = $region92
        $region91: #{tpu_custom_call.1} parent=79 // pred_region
          %s631 = sand.u32 %s33, 1
          %s632 = scalar_lea.sflag [#allocation12], %s631
          %s633 = sand.u32 %s265, 1
          %s634 = smul.addr %s633, 8
          %s635 = scalar_lea.vmem [#allocation13], %s634
          %637 = dma.done %s632, 128
        $region92: #{tpu_custom_call.1} parent=79 // pred_fallthru
          _
      $region80: #{tpu_custom_call.1} parent=5 // pred_fallthru
        _
    $region6: #{tpu_custom_call.1} parent=1 // loop_footer
      %s31 = sadd.s32 1, %s27
    $region7: #{tpu_custom_call.1} parent=1 // loop_footer_branch
      %26 = sbr.rel target = $region3
    $region8: #{tpu_custom_call.1} parent=1 // loop_exit
      _
    %638 = vsyncpa [#allocation3], 1
    %s639 = scalar_lea.sflag [#allocation3], 1
    %640 = vsyncpa %s639, 1
    %641 = vsyncpa [#allocation6], 1
    %642 = vsyncpa [#allocation9], 1
    %643 = vsyncpa [#allocation4], 1
    %s644 = scalar_lea.sflag [#allocation4], 1
    %645 = vsyncpa %s644, 1
    %646 = vsyncpa [#allocation12], 1
    %s647 = scalar_lea.sflag [#allocation12], 1
    %648 = vsyncpa %s647, 1

</llo_original>
